<compile_context>
chip_gen: v7x
topology: tpu7x:2x2x1
jax: 0.10.0
libtpu: 0.0.40
codegen_flags: <defaults>
</compile_context>

<pallas_src>
import functools
import math

import jax
import jax.numpy as jnp
from jax.experimental import pallas as pl
from jax.experimental.pallas import tpu as pltpu

GROUPS = 32
EPS = 1e-5


def _vmem_limit_bytes():
    """96 MiB on 128-MiB parts (v5e/v6e); conservative 48 MiB on 64-MiB parts (v7x)."""
    try:
        cap = pltpu.get_tpu_info().vmem_capacity_bytes
        if cap >= 100 * 1024 * 1024:
            return 96 * 1024 * 1024
    except Exception:  # pragma: no cover - info query unavailable
        pass
    return 48 * 1024 * 1024


_VMEM_LIMIT = _vmem_limit_bytes()


# --------------------------------------------------------------------------------------
# Pass 1: GroupNorm statistics (tiled over S, accumulated in VMEM scratch)
# --------------------------------------------------------------------------------------
def gn_stats_kernel(x_ref, m_ref, mt_ref, gamma_ref, beta_ref,
                    scale_ref, shift_ref, s1_ref, s2_ref, *, inv_cnt):
    t = pl.program_id(1)

    @pl.when(t == 0)
    def _():
        s1_ref[...] = jnp.zeros_like(s1_ref)
        s2_ref[...] = jnp.zeros_like(s2_ref)

    x = x_ref[0].astype(jnp.float32)                      # (ts, C)
    s1_ref[...] += jnp.sum(x, axis=0, keepdims=True)      # per-channel sum
    s2_ref[...] += jnp.sum(x * x, axis=0, keepdims=True)  # per-channel sum of squares

    @pl.when(t == pl.num_programs(1) - 1)
    def _():
        # Per-channel sums -> per-group moments via tiny membership matmuls (C x 32).
        # Note: single-pass E[x^2]-E[x]^2 with per-tile f32 partial sums; switch to a
        # two-pass / Welford scheme if activations ever have mean >> std.
        gs1 = jnp.dot(s1_ref[...], m_ref[...], preferred_element_type=jnp.float32)   # (1, G)
        gs2 = jnp.dot(s2_ref[...], m_ref[...], preferred_element_type=jnp.float32)   # (1, G)
        mean_g = gs1 * inv_cnt
        var_g = gs2 * inv_cnt - mean_g * mean_g            # biased variance (PyTorch GroupNorm)
        mean_c = jnp.dot(mean_g, mt_ref[...], preferred_element_type=jnp.float32)    # (1, C)
        var_c = jnp.dot(var_g, mt_ref[...], preferred_element_type=jnp.float32)      # (1, C)
        rstd_c = jax.lax.rsqrt(var_c + EPS)
        scale = gamma_ref[...] * rstd_c
        scale_ref[0] = scale
        shift_ref[0] = beta_ref[...] - mean_c * scale


# --------------------------------------------------------------------------------------
# Pass 2: one-time normalize + Q/K/V projection to bf16 HBM
# --------------------------------------------------------------------------------------
def qkv_project_kernel(x_ref, scale_ref, shift_ref, wq_ref, bq_ref, wk_ref, wv_ref,
                       q_ref, k_ref, v_ref, *, sm_scale):
    x = x_ref[0].astype(jnp.float32)                      # (tp, C)
    xn = (x * scale_ref[0] + shift_ref[0]).astype(jnp.bfloat16)
    # Q carries its bias and the folded softmax scale; K bias dropped (softmax invariance);
    # V bias deferred to the flash finalize (sum of probs == 1).
    q = jnp.dot(xn, wq_ref[...], preferred_element_type=jnp.float32) + bq_ref[...]
    q_ref[0] = (q * sm_scale).astype(jnp.bfloat16)
    k_ref[0] = jnp.dot(xn, wk_ref[...], preferred_element_type=jnp.float32).astype(jnp.bfloat16)
    v_ref[0] = jnp.dot(xn, wv_ref[...], preferred_element_type=jnp.float32).astype(jnp.bfloat16)


# --------------------------------------------------------------------------------------
# Pass 3: single-head flash attention + output projection + residual
# --------------------------------------------------------------------------------------
def flash_attn_kernel(q_ref, k_ref, v_ref, xres_ref, wo_ref, bo_ref, bv_ref,
                      o_ref, m_sc, l_sc, acc_sc):
    ki = pl.program_id(2)

    @pl.when(ki == 0)
    def _():
        m_sc[...] = jnp.full_like(m_sc, -jnp.inf)
        l_sc[...] = jnp.zeros_like(l_sc)
        acc_sc[...] = jnp.zeros_like(acc_sc)

    q = q_ref[0]                                          # (tq, C) bf16, pre-scaled
    k = k_ref[0]                                          # (tkv, C) bf16
    v = v_ref[0]                                          # (tkv, C) bf16

    # scores: contract the channel dims directly -- no explicit k.T transpose.
    s = jax.lax.dot_general(q, k, (((1,), (1,)), ((), ())),
                            preferred_element_type=jnp.float32)   # (tq, tkv)

    m_prev = m_sc[...]
    m_new = jnp.maximum(m_prev, jnp.max(s, axis=-1, keepdims=True))
    alpha = jnp.exp(m_prev - m_new)
    p = jnp.exp(s - m_new)
    l_sc[...] = alpha * l_sc[...] + jnp.sum(p, axis=-1, keepdims=True)
    acc_sc[...] = alpha * acc_sc[...] + jnp.dot(p.astype(jnp.bfloat16), v,
                                                preferred_element_type=jnp.float32)
    m_sc[...] = m_new

    # --- finalize: normalize accumulator, add deferred V bias, project, residual add ---
    @pl.when(ki == pl.num_programs(2) - 1)
    def _():
        inv_l = pl.reciprocal(l_sc[...], approx=True)      # EUP, off the (S,S) path
        attn = (acc_sc[...] * inv_l + bv_ref[...]).astype(jnp.bfloat16)   # (tq, C)
        out = jnp.dot(attn, wo_ref[...], preferred_element_type=jnp.float32) + bo_ref[...]
        o_ref[0] = (out + xres_ref[0].astype(jnp.float32)).astype(o_ref.dtype)


# --------------------------------------------------------------------------------------
# Wrappers
# --------------------------------------------------------------------------------------
def _pick_tile(s, target):
    """Largest multiple of 8 that divides s and is <= target; falls back to full s."""
    if s <= target:
        return s
    t = (min(target, s) // 8) * 8
    while t >= 8:
        if s % t == 0:
            return t
        t -= 8
    return s


def vae_attention_block_tokens(x_tok, params, *, tq=256, tkv=512, ts=2048, tp=1024):
    """x_tok: (N, S, C) token-major activations (channels on lanes)."""
    n, s, c = x_tok.shape
    assert c % GROUPS == 0
    gsz = c // GROUPS

    tq = _pick_tile(s, tq)
    tkv = _pick_tile(s, tkv)
    ts = _pick_tile(s, ts)
    tp = _pick_tile(s, tp)

    # Group-membership matrices for the tiny per-group reductions/broadcasts.
    m = (jnp.arange(c)[:, None] // gsz == jnp.arange(GROUPS)[None, :]).astype(jnp.float32)  # (C, G)
    mt = m.T                                                                                # (G, C)

    gamma = params["gamma"].reshape(1, c).astype(jnp.float32)
    beta = params["beta"].reshape(1, c).astype(jnp.float32)

    # ---------------- pass 1: GroupNorm coefficients (scale, shift) per batch ----------------
    stats_kernel = functools.partial(gn_stats_kernel, inv_cnt=1.0 / float(s * gsz))
    gn_scale, gn_shift = pl.pallas_call(
        stats_kernel,
        out_shape=(jax.ShapeDtypeStruct((n, 1, c), jnp.float32),
                   jax.ShapeDtypeStruct((n, 1, c), jnp.float32)),
        grid=(n, s // ts),
        in_specs=[
            pl.BlockSpec((1, ts, c), lambda b, t: (b, t, 0)),
            pl.BlockSpec((c, GROUPS), lambda b, t: (0, 0)),
            pl.BlockSpec((GROUPS, c), lambda b, t: (0, 0)),
            pl.BlockSpec((1, c), lambda b, t: (0, 0)),
            pl.BlockSpec((1, c), lambda b, t: (0, 0)),
        ],
        out_specs=(pl.BlockSpec((1, 1, c), lambda b, t: (b, 0, 0)),
                   pl.BlockSpec((1, 1, c), lambda b, t: (b, 0, 0))),
        scratch_shapes=[pltpu.VMEM((1, c), jnp.float32),
                        pltpu.VMEM((1, c), jnp.float32)],
        compiler_params=pltpu.CompilerParams(
            dimension_semantics=("parallel", "arbitrary"),
            vmem_limit_bytes=_VMEM_LIMIT),
    )(x_tok, m, mt, gamma, beta)

    # ---------------- pass 2: one-time Q/K/V projection, bf16 to HBM -------------------------
    wq = params["wq"].astype(jnp.bfloat16)
    wk = params["wk"].astype(jnp.bfloat16)
    wv = params["wv"].astype(jnp.bfloat16)
    wo = params["wo"].astype(jnp.bfloat16)
    bq = params["bq"].reshape(1, c).astype(jnp.float32)
    bv = params["bv"].reshape(1, c).astype(jnp.float32)
    bo = params["bo"].reshape(1, c).astype(jnp.float32)
    # params["bk"] intentionally unused: softmax is invariant to the per-row constant q.bk.

    proj_kernel = functools.partial(qkv_project_kernel, sm_scale=1.0 / math.sqrt(c))
    q_p, k_p, v_p = pl.pallas_call(
        proj_kernel,
        out_shape=(jax.ShapeDtypeStruct((n, s, c), jnp.bfloat16),
                   jax.ShapeDtypeStruct((n, s, c), jnp.bfloat16),
                   jax.ShapeDtypeStruct((n, s, c), jnp.bfloat16)),
        grid=(n, s // tp),
        in_specs=[
            pl.BlockSpec((1, tp, c), lambda b, t: (b, t, 0)),   # x
            pl.BlockSpec((1, 1, c), lambda b, t: (b, 0, 0)),    # GroupNorm scale
            pl.BlockSpec((1, 1, c), lambda b, t: (b, 0, 0)),    # GroupNorm shift
            pl.BlockSpec((c, c), lambda b, t: (0, 0)),          # wq (bf16)
            pl.BlockSpec((1, c), lambda b, t: (0, 0)),          # bq
            pl.BlockSpec((c, c), lambda b, t: (0, 0)),          # wk (bf16)
            pl.BlockSpec((c, c), lambda b, t: (0, 0)),          # wv (bf16)
        ],
        out_specs=(pl.BlockSpec((1, tp, c), lambda b, t: (b, t, 0)),
                   pl.BlockSpec((1, tp, c), lambda b, t: (b, t, 0)),
                   pl.BlockSpec((1, tp, c), lambda b, t: (b, t, 0))),
        compiler_params=pltpu.CompilerParams(
            dimension_semantics=("parallel", "parallel"),
            vmem_limit_bytes=_VMEM_LIMIT),
    )(x_tok, gn_scale, gn_shift, wq, bq, wk, wv)

    # ---------------- pass 3: flash attention (bf16 MXU operands, f32 accumulation) ----------
    out_tok = pl.pallas_call(
        flash_attn_kernel,
        out_shape=jax.ShapeDtypeStruct((n, s, c), x_tok.dtype),
        grid=(n, s // tq, s // tkv),
        in_specs=[
            pl.BlockSpec((1, tq, c), lambda b, qi, ki: (b, qi, 0)),    # q (bf16, pre-scaled)
            pl.BlockSpec((1, tkv, c), lambda b, qi, ki: (b, ki, 0)),   # k (bf16)
            pl.BlockSpec((1, tkv, c), lambda b, qi, ki: (b, ki, 0)),   # v (bf16)
            pl.BlockSpec((1, tq, c), lambda b, qi, ki: (b, qi, 0)),    # x residual (q-tile)
            pl.BlockSpec((c, c), lambda b, qi, ki: (0, 0)),            # wo (bf16)
            pl.BlockSpec((1, c), lambda b, qi, ki: (0, 0)),            # bo
            pl.BlockSpec((1, c), lambda b, qi, ki: (0, 0)),            # bv (deferred V bias)
        ],
        out_specs=pl.BlockSpec((1, tq, c), lambda b, qi, ki: (b, qi, 0)),
        scratch_shapes=[
            pltpu.VMEM((tq, 1), jnp.float32),    # running row max
            pltpu.VMEM((tq, 1), jnp.float32),    # running denominator
            pltpu.VMEM((tq, c), jnp.float32),    # output accumulator
        ],
        compiler_params=pltpu.CompilerParams(
            dimension_semantics=("parallel", "parallel", "arbitrary"),
            vmem_limit_bytes=_VMEM_LIMIT),
    )(q_p, k_p, v_p, x_tok, wo, bo, bv)

    return out_tok


def vae_attention_block(x_nchw, params, **tile_kwargs):
    """PyTorch-shaped (N, C, H, W) interface around the token-major kernels."""
    n, c, h, w = x_nchw.shape
    s = h * w
    # TODO(synk): fuse these NCHW<->NSC transposes into the surrounding convs to avoid
    #             two full-tensor HBM round trips.
    x_tok = jnp.transpose(x_nchw.reshape(n, c, s), (0, 2, 1))
    out_tok = vae_attention_block_tokens(x_tok, params, **tile_kwargs)
    return jnp.transpose(out_tok, (0, 2, 1)).reshape(n, c, h, w)


# --------------------------------------------------------------------------------------
# Pure-JAX f32 reference matching the PyTorch forward
# --------------------------------------------------------------------------------------
def reference(x, params):
    n, c, h, w = x.shape
    gsz = c // GROUPS
    xg = x.reshape(n, GROUPS, gsz, h, w).astype(jnp.float32)
    mean = xg.mean(axis=(2, 3, 4), keepdims=True)
    var = xg.var(axis=(2, 3, 4), keepdims=True)
    xn = ((xg - mean) / jnp.sqrt(var + EPS)).reshape(n, c, h, w)
    xn = xn * params["gamma"].reshape(1, c, 1, 1) + params["beta"].reshape(1, c, 1, 1)
    t = jnp.transpose(xn.reshape(n, c, h * w), (0, 2, 1))               # (N, S, C)
    q = t @ params["wq"] + params["bq"]
    k = t @ params["wk"] + params["bk"]
    v = t @ params["wv"] + params["bv"]
    scores = jnp.einsum("nsc,ntc->nst", q, k) / math.sqrt(c)
    p = jax.nn.softmax(scores, axis=-1)
    o = jnp.einsum("nst,ntc->nsc", p, v)
    o = o @ params["wo"] + params["bo"]
    o = jnp.transpose(o, (0, 2, 1)).reshape(n, c, h, w)
    return o + x


def init_params(key, c):
    ks = jax.random.split(key, 8)
    scale = 1.0 / math.sqrt(c)
    return {
        "gamma": jnp.ones((c,), jnp.float32),
        "beta": jnp.zeros((c,), jnp.float32),
        "wq": jax.random.normal(ks[0], (c, c), jnp.float32) * scale,   # x @ W layout
        "wk": jax.random.normal(ks[1], (c, c), jnp.float32) * scale,
        "wv": jax.random.normal(ks[2], (c, c), jnp.float32) * scale,
        "wo": jax.random.normal(ks[3], (c, c), jnp.float32) * scale,
        "bq": jax.random.normal(ks[4], (c,), jnp.float32) * 0.01,
        "bk": jax.random.normal(ks[5], (c,), jnp.float32) * 0.01,
        "bv": jax.random.normal(ks[6], (c,), jnp.float32) * 0.01,
        "bo": jax.random.normal(ks[7], (c,), jnp.float32) * 0.01,
    }


if __name__ == "__main__":
    # channels must be divisible by 32 (GroupNorm(32, C)); C=128 exercises one full lane
    # width; small spatial keeps the test cheap while still running multi-tile paths.
    N, C, H, W = 2, 128, 16, 16            # S = 256 spatial tokens
    key = jax.random.PRNGKey(0)
    kx, kp = jax.random.split(key)
    x = jax.random.normal(kx, (N, C, H, W), jnp.float32)
    params = init_params(kp, C)

    # Small tiles to exercise the multi-tile stats, projection, and online-softmax paths.
    out = vae_attention_block(x, params, tq=64, tkv=64, ts=64, tp=64)
    out = jax.block_until_ready(out)

    ref = reference(x, params)
    assert out.shape == (N, C, H, W)
    # bf16 MXU operands (f32 accumulation) + approx reciprocal vs a pure-f32 reference.
    err = jnp.max(jnp.abs(out - ref))
    assert jnp.allclose(out, ref, atol=7.5e-2, rtol=7.5e-2), f"max abs err {err}"

    print("KERNEL_OK")
</pallas_src>

<mosaic_0001>
module attributes {stable_mosaic.version = 11 : i64} {
  func.func @gn_stats_kernel(%arg0: i32, %arg1: i32, %arg2: memref<1x64x128xf32, #tpu.memory_space<vmem>>, %arg3: memref<128x32xf32, #tpu.memory_space<vmem>>, %arg4: memref<32x128xf32, #tpu.memory_space<vmem>>, %arg5: memref<1x128xf32, #tpu.memory_space<vmem>>, %arg6: memref<1x128xf32, #tpu.memory_space<vmem>>, %arg7: memref<1x1x128xf32, #tpu.memory_space<vmem>>, %arg8: memref<1x1x128xf32, #tpu.memory_space<vmem>>, %arg9: memref<1x128xf32, #tpu.memory_space<vmem>>, %arg10: memref<1x128xf32, #tpu.memory_space<vmem>>) attributes {dimension_semantics = [#tpu.dimension_semantics<parallel>, #tpu.dimension_semantics<arbitrary>], iteration_bounds = array<i64: 2, 4>, scalar_prefetch = 0 : i64, scratch_operands = 2 : i64, tpu.core_type = #tpu.core_type<tc>, window_params = [{transform_indices = @transform_0, window_bounds = array<i64: 1, 64, 128>}, {pipeline_mode = #tpu.pipeline_mode<synchronous>, transform_indices = @transform_1, window_bounds = array<i64: 128, 32>}, {pipeline_mode = #tpu.pipeline_mode<synchronous>, transform_indices = @transform_2, window_bounds = array<i64: 32, 128>}, {pipeline_mode = #tpu.pipeline_mode<synchronous>, transform_indices = @transform_3, window_bounds = array<i64: 1, 128>}, {pipeline_mode = #tpu.pipeline_mode<synchronous>, transform_indices = @transform_4, window_bounds = array<i64: 1, 128>}, {transform_indices = @transform_5, window_bounds = array<i64: 1, 1, 128>}, {transform_indices = @transform_6, window_bounds = array<i64: 1, 1, 128>}]} {
    %c0_i32 = arith.constant 0 : i32
    %0 = arith.cmpi eq, %arg1, %c0_i32 : i32
    %1 = arith.extui %0 : i1 to i32
    %c0_i32_0 = arith.constant 0 : i32
    %2 = arith.cmpi ne, %1, %c0_i32_0 : i32
    scf.if %2 {
      %cst_13 = arith.constant 0.000000e+00 : f32
      %19 = vector.broadcast %cst_13 : f32 to vector<1x128xf32>
      %c0_14 = arith.constant 0 : index
      %c0_15 = arith.constant 0 : index
      %20 = vector.load %arg9[%c0_14, %c0_15] : memref<1x128xf32, #tpu.memory_space<vmem>>, vector<1x128xf32>
      tpu.vector_store %arg9[%c0_14, %c0_15], %19 {strides = array<i32>} : memref<1x128xf32, #tpu.memory_space<vmem>>, vector<1x128xf32>,
      %cst_16 = arith.constant 0.000000e+00 : f32
      %21 = vector.broadcast %cst_16 : f32 to vector<1x128xf32>
      %c0_17 = arith.constant 0 : index
      %c0_18 = arith.constant 0 : index
      %22 = vector.load %arg10[%c0_17, %c0_18] : memref<1x128xf32, #tpu.memory_space<vmem>>, vector<1x128xf32>
      tpu.vector_store %arg10[%c0_17, %c0_18], %21 {strides = array<i32>} : memref<1x128xf32, #tpu.memory_space<vmem>>, vector<1x128xf32>,
    } else {
    }
    %c0 = arith.constant 0 : index
    %c0_1 = arith.constant 0 : index
    %c0_2 = arith.constant 0 : index
    %3 = vector.load %arg2[%c0, %c0_1, %c0_2] : memref<1x64x128xf32, #tpu.memory_space<vmem>>, vector<1x64x128xf32>
    %4 = vector.shape_cast %3 : vector<1x64x128xf32> to vector<64x128xf32>
    %c0_3 = arith.constant 0 : index
    %c0_4 = arith.constant 0 : index
    %5 = vector.load %arg9[%c0_3, %c0_4] : memref<1x128xf32, #tpu.memory_space<vmem>>, vector<1x128xf32>
    %cst = arith.constant dense<0.000000e+00> : vector<128xf32>
    %6 = vector.multi_reduction <add>, %4, %cst [0] : vector<64x128xf32> to vector<128xf32>
    %7 = vector.shape_cast %6 : vector<128xf32> to vector<1x128xf32>
    %8 = arith.addf %5, %7 : vector<1x128xf32>
    %c0_5 = arith.constant 0 : index
    %c0_6 = arith.constant 0 : index
    %9 = vector.load %arg9[%c0_5, %c0_6] : memref<1x128xf32, #tpu.memory_space<vmem>>, vector<1x128xf32>
    tpu.vector_store %arg9[%c0_5, %c0_6], %8 {strides = array<i32>} : memref<1x128xf32, #tpu.memory_space<vmem>>, vector<1x128xf32>,
    %c0_7 = arith.constant 0 : index
    %c0_8 = arith.constant 0 : index
    %10 = vector.load %arg10[%c0_7, %c0_8] : memref<1x128xf32, #tpu.memory_space<vmem>>, vector<1x128xf32>
    %11 = arith.mulf %4, %4 : vector<64x128xf32>
    %cst_9 = arith.constant dense<0.000000e+00> : vector<128xf32>
    %12 = vector.multi_reduction <add>, %11, %cst_9 [0] : vector<64x128xf32> to vector<128xf32>
    %13 = vector.shape_cast %12 : vector<128xf32> to vector<1x128xf32>
    %14 = arith.addf %10, %13 : vector<1x128xf32>
    %c0_10 = arith.constant 0 : index
    %c0_11 = arith.constant 0 : index
    %15 = vector.load %arg10[%c0_10, %c0_11] : memref<1x128xf32, #tpu.memory_space<vmem>>, vector<1x128xf32>
    tpu.vector_store %arg10[%c0_10, %c0_11], %14 {strides = array<i32>} : memref<1x128xf32, #tpu.memory_space<vmem>>, vector<1x128xf32>,
    %c3_i32 = arith.constant 3 : i32
    %16 = arith.cmpi eq, %arg1, %c3_i32 : i32
    %17 = arith.extui %16 : i1 to i32
    %c0_i32_12 = arith.constant 0 : i32
    %18 = arith.cmpi ne, %17, %c0_i32_12 : i32
    scf.if %18 {
      %c0_13 = arith.constant 0 : index
      %c0_14 = arith.constant 0 : index
      %19 = vector.load %arg9[%c0_13, %c0_14] : memref<1x128xf32, #tpu.memory_space<vmem>>, vector<1x128xf32>
      %c0_15 = arith.constant 0 : index
      %c0_16 = arith.constant 0 : index
      %20 = vector.load %arg3[%c0_15, %c0_16] : memref<128x32xf32, #tpu.memory_space<vmem>>, vector<128x32xf32>
      %cst_17 = arith.constant dense<0.000000e+00> : vector<1x32xf32>
      %21 = tpu.matmul %19, %20, %cst_17 {dimension_numbers = #tpu.dot_dimension_numbers<[1], [0], [0], [1], [0, 0, 1, 1], [], []>} : vector<1x128xf32>, vector<128x32xf32>, vector<1x32xf32> -> vector<1x32xf32>
      %c0_18 = arith.constant 0 : index
      %c0_19 = arith.constant 0 : index
      %22 = vector.load %arg10[%c0_18, %c0_19] : memref<1x128xf32, #tpu.memory_space<vmem>>, vector<1x128xf32>
      %c0_20 = arith.constant 0 : index
      %c0_21 = arith.constant 0 : index
      %23 = vector.load %arg3[%c0_20, %c0_21] : memref<128x32xf32, #tpu.memory_space<vmem>>, vector<128x32xf32>
      %cst_22 = arith.constant dense<0.000000e+00> : vector<1x32xf32>
      %24 = tpu.matmul %22, %23, %cst_22 {dimension_numbers = #tpu.dot_dimension_numbers<[1], [0], [0], [1], [0, 0, 1, 1], [], []>} : vector<1x128xf32>, vector<128x32xf32>, vector<1x32xf32> -> vector<1x32xf32>
      %cst_23 = arith.constant 9.765625E-4 : f32
      %25 = vector.broadcast %cst_23 : f32 to vector<1x32xf32>
      %26 = arith.mulf %21, %25 : vector<1x32xf32>
      %cst_24 = arith.constant 9.765625E-4 : f32
      %27 = vector.broadcast %cst_24 : f32 to vector<1x32xf32>
      %28 = arith.mulf %24, %27 : vector<1x32xf32>
      %29 = arith.mulf %26, %26 : vector<1x32xf32>
      %30 = arith.subf %28, %29 : vector<1x32xf32>
      %c0_25 = arith.constant 0 : index
      %c0_26 = arith.constant 0 : index
      %31 = vector.load %arg4[%c0_25, %c0_26] : memref<32x128xf32, #tpu.memory_space<vmem>>, vector<32x128xf32>
      %cst_27 = arith.constant dense<0.000000e+00> : vector<1x128xf32>
      %32 = tpu.matmul %26, %31, %cst_27 {dimension_numbers = #tpu.dot_dimension_numbers<[1], [0], [0], [1], [0, 0, 1, 1], [], []>} : vector<1x32xf32>, vector<32x128xf32>, vector<1x128xf32> -> vector<1x128xf32>
      %c0_28 = arith.constant 0 : index
      %c0_29 = arith.constant 0 : index
      %33 = vector.load %arg4[%c0_28, %c0_29] : memref<32x128xf32, #tpu.memory_space<vmem>>, vector<32x128xf32>
      %cst_30 = arith.constant dense<0.000000e+00> : vector<1x128xf32>
      %34 = tpu.matmul %30, %33, %cst_30 {dimension_numbers = #tpu.dot_dimension_numbers<[1], [0], [0], [1], [0, 0, 1, 1], [], []>} : vector<1x32xf32>, vector<32x128xf32>, vector<1x128xf32> -> vector<1x128xf32>
      %cst_31 = arith.constant 9.99999974E-6 : f32
      %35 = vector.broadcast %cst_31 : f32 to vector<1x128xf32>
      %36 = arith.addf %34, %35 : vector<1x128xf32>
      %37 = math.rsqrt %36 : vector<1x128xf32>
      %c0_32 = arith.constant 0 : index
      %c0_33 = arith.constant 0 : index
      %38 = vector.load %arg5[%c0_32, %c0_33] : memref<1x128xf32, #tpu.memory_space<vmem>>, vector<1x128xf32>
      %39 = arith.mulf %38, %37 : vector<1x128xf32>
      %c0_34 = arith.constant 0 : index
      %c0_35 = arith.constant 0 : index
      %c0_36 = arith.constant 0 : index
      %40 = vector.load %arg7[%c0_34, %c0_35, %c0_36] : memref<1x1x128xf32, #tpu.memory_space<vmem>>, vector<1x1x128xf32>
      %41 = vector.shape_cast %40 : vector<1x1x128xf32> to vector<1x128xf32>
      %42 = vector.shape_cast %39 : vector<1x128xf32> to vector<1x1x128xf32>
      tpu.vector_store %arg7[%c0_34, %c0_35, %c0_36], %42 {strides = array<i32>} : memref<1x1x128xf32, #tpu.memory_space<vmem>>, vector<1x1x128xf32>,
      %c0_37 = arith.constant 0 : index
      %c0_38 = arith.constant 0 : index
      %43 = vector.load %arg6[%c0_37, %c0_38] : memref<1x128xf32, #tpu.memory_space<vmem>>, vector<1x128xf32>
      %44 = arith.mulf %32, %39 : vector<1x128xf32>
      %45 = arith.subf %43, %44 : vector<1x128xf32>
      %c0_39 = arith.constant 0 : index
      %c0_40 = arith.constant 0 : index
      %c0_41 = arith.constant 0 : index
      %46 = vector.load %arg8[%c0_39, %c0_40, %c0_41] : memref<1x1x128xf32, #tpu.memory_space<vmem>>, vector<1x1x128xf32>
      %47 = vector.shape_cast %46 : vector<1x1x128xf32> to vector<1x128xf32>
      %48 = vector.shape_cast %45 : vector<1x128xf32> to vector<1x1x128xf32>
      tpu.vector_store %arg8[%c0_39, %c0_40, %c0_41], %48 {strides = array<i32>} : memref<1x1x128xf32, #tpu.memory_space<vmem>>, vector<1x1x128xf32>,
    } else {
    }
    return
  }
  func.func @transform_0(%arg0: i32, %arg1: i32) -> (i32, i32, i32) {
    %c0_i32 = arith.constant 0 : i32
    %c0_i32_0 = arith.constant 0 : i32
    return %arg0, %arg1, %c0_i32 : i32, i32, i32
  }
  func.func @transform_1(%arg0: i32, %arg1: i32) -> (i32, i32) {
    %c0_i32 = arith.constant 0 : i32
    %c0_i32_0 = arith.constant 0 : i32
    %c0_i32_1 = arith.constant 0 : i32
    return %c0_i32, %c0_i32_0 : i32, i32
  }
  func.func @transform_2(%arg0: i32, %arg1: i32) -> (i32, i32) {
    %c0_i32 = arith.constant 0 : i32
    %c0_i32_0 = arith.constant 0 : i32
    %c0_i32_1 = arith.constant 0 : i32
    return %c0_i32, %c0_i32_0 : i32, i32
  }
  func.func @transform_3(%arg0: i32, %arg1: i32) -> (i32, i32) {
    %c0_i32 = arith.constant 0 : i32
    %c0_i32_0 = arith.constant 0 : i32
    %c0_i32_1 = arith.constant 0 : i32
    return %c0_i32, %c0_i32_0 : i32, i32
  }
  func.func @transform_4(%arg0: i32, %arg1: i32) -> (i32, i32) {
    %c0_i32 = arith.constant 0 : i32
    %c0_i32_0 = arith.constant 0 : i32
    %c0_i32_1 = arith.constant 0 : i32
    return %c0_i32, %c0_i32_0 : i32, i32
  }
  func.func @transform_5(%arg0: i32, %arg1: i32) -> (i32, i32, i32) {
    %c0_i32 = arith.constant 0 : i32
    %c0_i32_0 = arith.constant 0 : i32
    %c0_i32_1 = arith.constant 0 : i32
    return %arg0, %c0_i32, %c0_i32_0 : i32, i32, i32
  }
  func.func @transform_6(%arg0: i32, %arg1: i32) -> (i32, i32, i32) {
    %c0_i32 = arith.constant 0 : i32
    %c0_i32_0 = arith.constant 0 : i32
    %c0_i32_1 = arith.constant 0 : i32
    return %arg0, %c0_i32, %c0_i32_0 : i32, i32, i32
  }
}

</mosaic_0001>

<llo_original>
// kernel: tpu_custom_call.1
$region0: #{tpu_custom_call.1}
  #allocation0 [shape = 'u32[]', space=smem, size = 0x4, offset = 0x4, fixed_abs, tag = 'smem constant byte address 0x4 - core index']
  #allocation1 [shape = 'u32[144,128]{1,0:T(1,128)}', space=vmem, size = 0x12000, scoped, tag = 'internal scratch']
  #allocation2 [shape = 'f32[1,128]{1,0:T(1,128)}', space=vmem, size = 0x200, scoped, tag = 'scratch operand']
  #allocation3 [shape = 'f32[1,128]{1,0:T(1,128)}', space=vmem, size = 0x200, scoped, tag = 'scratch operand']
  %s0 = inlined_call_operand.hbm [shape: f32[2,256,128], index: 0, kind: input, shape index: {}]
  %s1 = inlined_call_operand.vmem [shape: f32[128,32], index: 1, kind: input, shape index: {}]
  %s2 = inlined_call_operand.vmem [shape: f32[32,128], index: 2, kind: input, shape index: {}]
  %s3 = inlined_call_operand.vmem [shape: f32[1,128], index: 3, kind: input, shape index: {}]
  %s4 = inlined_call_operand.vmem [shape: f32[1,128], index: 4, kind: input, shape index: {}]
  %s5 = inlined_call_operand.hbm [shape: f32[2,1,128], index: 5, kind: output, shape index: {0}]
  %s6 = inlined_call_operand.hbm [shape: f32[2,1,128], index: 6, kind: output, shape index: {1}]
  %7 = xla_tuple %s5, %s6
  %s8 = sld [smem:[#allocation0]]
  $region73: #{tpu_custom_call.1} parent=0
    _
  %s10 = ssub.s32 1, %s8
  %s11 = scalar_select 0, %s10, %s8
  $region1: #{tpu_custom_call.1} parent=0
    #allocation4 [shape = 'u8[65536]{0}', space=vmem, size = 0x10000, scoped, tag = 'input window, operand 0']
    #allocation5 [shape = 's32[2]{0}', space=sflag, size = 0x8, scoped, tag = 'scoped memory for tpu_custom_call.1']
    #allocation6 [shape = 's32[2]{0}', space=sflag, size = 0x8, scoped, tag = 'scoped memory for tpu_custom_call.1']
    #allocation7 [shape = 'u8[1024]{0}', space=vmem, size = 0x400, scoped, tag = 'output window, operand 0']
    #allocation8 [shape = 'u8[1024]{0}', space=vmem, size = 0x400, scoped, tag = 'output window, operand 1']
    #allocation9 [shape = 's32[2]{0}', space=sflag, size = 0x8, scoped, tag = 'scoped memory for tpu_custom_call.1']
    %12 = vsyncpa [#allocation5], 0
    %s13 = scalar_lea.sflag [#allocation5], 1
    %14 = vsyncpa %s13, 0
    %15 = vsyncpa [#allocation6], 0
    %s16 = scalar_lea.sflag [#allocation6], 1
    %17 = vsyncpa %s16, 0
    %18 = vsyncpa [#allocation9], 0
    %s19 = scalar_lea.sflag [#allocation9], 1
    %20 = vsyncpa %s19, 0
    loop: start=0, step=1, limit=10
    $region2: #{tpu_custom_call.1} parent=1 // loop_pre_header
      _
    $region3: #{tpu_custom_call.1} parent=1 // loop_header
      %s22 = sphi 0, %s26
      %p23 = scmp.ge.s32.totalorder %s22, 10
      %s29 = sphi 0, %s41
      %s30 = sphi 0, %s37
      %s31 = sphi 0, %s29
      %s32 = sphi 0, %s30
      %s33 = sphi 0, %s31
      %s34 = sphi 0, %s32
      %s46 = sphi 0, %s48
      %s49 = sphi 0, %s46
      %s50 = sphi 0, %s49
      %s66 = sphi 0, %s50
      %s70 = sphi 0, %s70
      %s72 = sphi 0, %s70
      %s73 = sphi 0, %s72
      %s87 = sphi 0, %s73
      %s91 = sphi 0, %s91
      %s93 = sphi 0, %s91
      %s94 = sphi 0, %s93
      %s108 = sphi 0, %s94
      %s112 = sphi 0, %s112
      %s114 = sphi 0, %s112
      %s115 = sphi 0, %s114
      %s129 = sphi 0, %s115
      %s133 = sphi 0, %s133
      %s135 = sphi 0, %s133
      %s136 = sphi 0, %s135
      %s150 = sphi 0, %s136
      %s156 = sphi 0, %s158
      %s159 = sphi 0, %s156
      %s160 = sphi 0, %s159
      %s176 = sphi 0, %s160
      %s182 = sphi 0, %s184
      %s185 = sphi 0, %s182
      %s186 = sphi 0, %s185
      %s202 = sphi 0, %s186
    $region4: #{tpu_custom_call.1} parent=1 // loop_header_branch
      %25 = sbr.rel (%p23) target = $region8
    $region5: #{tpu_custom_call.1} parent=1 // loop_body
      %s27 = ssub.s32 %s22, 1
      %s28 = ssub.s32 %s22, 2
      %s35 = sadd.s32 1, %s30
      %p36 = scmp.ge.s32.totalorder %s35, 4
      %s37 = scalar_select %p36, 0, %s35
      %s38 = sadd.s32 1, %s29
      %s39 = scalar_select %p36, %s38, %s29
      %p40 = scmp.ge.s32.totalorder %s39, 2
      %s41 = scalar_select %p40, 0, %s39
      %s42 = ssub.s32 %s29, %s41
      %s43 = ssub.s32 %s30, %s37
      %s44 = sor.u32 %s42, %s43
      %p45 = scmp.eq.s32.totalorder %s44, 0
      %s47 = sadd.s32 %s46, 1
      %s48 = scalar_select %p45, %s46, %s47
      %p51 = pneg %p45
      %p52 = scmp.eq.s32.totalorder %s22, 7
      %p53 = por %p51, %p52
      %p54 = scmp.ne.s32.totalorder %s46, %s49
      %p55 = scmp.eq.s32.totalorder %s22, 0
      %p56 = por %p54, %p55
      %p57 = scmp.ne.s32.totalorder %s46, %s49
      %p58 = scmp.eq.s32.totalorder %s27, 7
      %p59 = por %p57, %p58
      %p60 = scmp.ne.s32.totalorder %s49, %s50
      %p61 = scmp.eq.s32.totalorder %s27, 0
      %p62 = por %p60, %p61
      %p63 = scmp.ne.s32.totalorder %s49, %s50
      %p64 = scmp.eq.s32.totalorder %s28, 7
      %p65 = por %p63, %p64
      %p67 = scmp.ne.s32.totalorder %s50, %s66
      %p68 = scmp.eq.s32.totalorder %s28, 0
      %p69 = por %p67, %p68
      %s71 = sadd.s32 %s70, 1
      %p74 = scmp.eq.s32.totalorder %s22, 7
      %p75 = scmp.ne.s32.totalorder %s70, %s72
      %p76 = scmp.eq.s32.totalorder %s22, 0
      %p77 = por %p75, %p76
      %p78 = scmp.ne.s32.totalorder %s70, %s72
      %p79 = scmp.eq.s32.totalorder %s27, 7
      %p80 = por %p78, %p79
      %p81 = scmp.ne.s32.totalorder %s72, %s73
      %p82 = scmp.eq.s32.totalorder %s27, 0
      %p83 = por %p81, %p82
      %p84 = scmp.ne.s32.totalorder %s72, %s73
      %p85 = scmp.eq.s32.totalorder %s28, 7
      %p86 = por %p84, %p85
      %p88 = scmp.ne.s32.totalorder %s73, %s87
      %p89 = scmp.eq.s32.totalorder %s28, 0
      %p90 = por %p88, %p89
      %s92 = sadd.s32 %s91, 1
      %p95 = scmp.eq.s32.totalorder %s22, 7
      %p96 = scmp.ne.s32.totalorder %s91, %s93
      %p97 = scmp.eq.s32.totalorder %s22, 0
      %p98 = por %p96, %p97
      %p99 = scmp.ne.s32.totalorder %s91, %s93
      %p100 = scmp.eq.s32.totalorder %s27, 7
      %p101 = por %p99, %p100
      %p102 = scmp.ne.s32.totalorder %s93, %s94
      %p103 = scmp.eq.s32.totalorder %s27, 0
      %p104 = por %p102, %p103
      %p105 = scmp.ne.s32.totalorder %s93, %s94
      %p106 = scmp.eq.s32.totalorder %s28, 7
      %p107 = por %p105, %p106
      %p109 = scmp.ne.s32.totalorder %s94, %s108
      %p110 = scmp.eq.s32.totalorder %s28, 0
      %p111 = por %p109, %p110
      %s113 = sadd.s32 %s112, 1
      %p116 = scmp.eq.s32.totalorder %s22, 7
      %p117 = scmp.ne.s32.totalorder %s112, %s114
      %p118 = scmp.eq.s32.totalorder %s22, 0
      %p119 = por %p117, %p118
      %p120 = scmp.ne.s32.totalorder %s112, %s114
      %p121 = scmp.eq.s32.totalorder %s27, 7
      %p122 = por %p120, %p121
      %p123 = scmp.ne.s32.totalorder %s114, %s115
      %p124 = scmp.eq.s32.totalorder %s27, 0
      %p125 = por %p123, %p124
      %p126 = scmp.ne.s32.totalorder %s114, %s115
      %p127 = scmp.eq.s32.totalorder %s28, 7
      %p128 = por %p126, %p127
      %p130 = scmp.ne.s32.totalorder %s115, %s129
      %p131 = scmp.eq.s32.totalorder %s28, 0
      %p132 = por %p130, %p131
      %s134 = sadd.s32 %s133, 1
      %p137 = scmp.eq.s32.totalorder %s22, 7
      %p138 = scmp.ne.s32.totalorder %s133, %s135
      %p139 = scmp.eq.s32.totalorder %s22, 0
      %p140 = por %p138, %p139
      %p141 = scmp.ne.s32.totalorder %s133, %s135
      %p142 = scmp.eq.s32.totalorder %s27, 7
      %p143 = por %p141, %p142
      %p144 = scmp.ne.s32.totalorder %s135, %s136
      %p145 = scmp.eq.s32.totalorder %s27, 0
      %p146 = por %p144, %p145
      %p147 = scmp.ne.s32.totalorder %s135, %s136
      %p148 = scmp.eq.s32.totalorder %s28, 7
      %p149 = por %p147, %p148
      %p151 = scmp.ne.s32.totalorder %s136, %s150
      %p152 = scmp.eq.s32.totalorder %s28, 0
      %p153 = por %p151, %p152
      %s154 = ssub.s32 %s29, %s41
      %p155 = scmp.eq.s32.totalorder %s154, 0
      %s157 = sadd.s32 %s156, 1
      %s158 = scalar_select %p155, %s156, %s157
      %p161 = pneg %p155
      %p162 = scmp.eq.s32.totalorder %s22, 7
      %p163 = por %p161, %p162
      %p164 = scmp.ne.s32.totalorder %s156, %s159
      %p165 = scmp.eq.s32.totalorder %s22, 0
      %p166 = por %p164, %p165
      %p167 = scmp.ne.s32.totalorder %s156, %s159
      %p168 = scmp.eq.s32.totalorder %s27, 7
      %p169 = por %p167, %p168
      %p170 = scmp.ne.s32.totalorder %s159, %s160
      %p171 = scmp.eq.s32.totalorder %s27, 0
      %p172 = por %p170, %p171
      %p173 = scmp.ne.s32.totalorder %s159, %s160
      %p174 = scmp.eq.s32.totalorder %s28, 7
      %p175 = por %p173, %p174
      %p177 = scmp.ne.s32.totalorder %s160, %s176
      %p178 = scmp.eq.s32.totalorder %s28, 0
      %p179 = por %p177, %p178
      %s180 = ssub.s32 %s29, %s41
      %p181 = scmp.eq.s32.totalorder %s180, 0
      %s183 = sadd.s32 %s182, 1
      %s184 = scalar_select %p181, %s182, %s183
      %p187 = pneg %p181
      %p188 = scmp.eq.s32.totalorder %s22, 7
      %p189 = por %p187, %p188
      %p190 = scmp.ne.s32.totalorder %s182, %s185
      %p191 = scmp.eq.s32.totalorder %s22, 0
      %p192 = por %p190, %p191
      %p193 = scmp.ne.s32.totalorder %s182, %s185
      %p194 = scmp.eq.s32.totalorder %s27, 7
      %p195 = por %p193, %p194
      %p196 = scmp.ne.s32.totalorder %s185, %s186
      %p197 = scmp.eq.s32.totalorder %s27, 0
      %p198 = por %p196, %p197
      %p199 = scmp.ne.s32.totalorder %s185, %s186
      %p200 = scmp.eq.s32.totalorder %s28, 7
      %p201 = por %p199, %p200
      %p203 = scmp.ne.s32.totalorder %s186, %s202
      %p204 = scmp.eq.s32.totalorder %s28, 0
      %p205 = por %p203, %p204
      %p206 = scmp.le.s32.totalorder 1, %s22
      %p207 = scmp.lt.s32.totalorder %s22, 9
      %p208 = pnand %p206, %p207
      %p209 = pneg %p208
      // Predicated region
      $region9: #{tpu_custom_call.1} parent=5 // pred_check
        _
      $region10: #{tpu_custom_call.1} parent=5 // pred_check_branch
        %211 = sbr.rel (%p208) target = $region12
      $region11: #{tpu_custom_call.1} parent=5 // pred_region
        %s212 = ssub.s32 %s22, 1
        // Predicated region
        $region13: #{tpu_custom_call.1} parent=11 // pred_check
          %p213 = pneg %p83
        $region14: #{tpu_custom_call.1} parent=11 // pred_check_branch
          %215 = sbr.rel (%p213) target = $region16
        $region15: #{tpu_custom_call.1} parent=11 // pred_region
          _
        $region16: #{tpu_custom_call.1} parent=11 // pred_fallthru
          _
        // Predicated region
        $region17: #{tpu_custom_call.1} parent=11 // pred_check
          %p216 = pneg %p104
        $region18: #{tpu_custom_call.1} parent=11 // pred_check_branch
          %218 = sbr.rel (%p216) target = $region20
        $region19: #{tpu_custom_call.1} parent=11 // pred_region
          _
        $region20: #{tpu_custom_call.1} parent=11 // pred_fallthru
          _
        // Predicated region
        $region21: #{tpu_custom_call.1} parent=11 // pred_check
          %p219 = pneg %p125
        $region22: #{tpu_custom_call.1} parent=11 // pred_check_branch
          %221 = sbr.rel (%p219) target = $region24
        $region23: #{tpu_custom_call.1} parent=11 // pred_region
          _
        $region24: #{tpu_custom_call.1} parent=11 // pred_fallthru
          _
        // Predicated region
        $region25: #{tpu_custom_call.1} parent=11 // pred_check
          %p222 = pneg %p146
        $region26: #{tpu_custom_call.1} parent=11 // pred_check_branch
          %224 = sbr.rel (%p222) target = $region28
        $region27: #{tpu_custom_call.1} parent=11 // pred_region
          _
        $region28: #{tpu_custom_call.1} parent=11 // pred_fallthru
          _
      $region12: #{tpu_custom_call.1} parent=5 // pred_fallthru
        _
      %p225 = scmp.lt.s32.totalorder %s22, 8
      // Predicated region
      $region29: #{tpu_custom_call.1} parent=5 // pred_check
        %p226 = pneg %p225
      $region30: #{tpu_custom_call.1} parent=5 // pred_check_branch
        %228 = sbr.rel (%p226) target = $region32
      $region31: #{tpu_custom_call.1} parent=5 // pred_region
        // Predicated region
        $region33: #{tpu_custom_call.1} parent=31 // pred_check
          %p229 = pneg %p56
        $region34: #{tpu_custom_call.1} parent=31 // pred_check_branch
          %231 = sbr.rel (%p229) target = $region36
        $region35: #{tpu_custom_call.1} parent=31 // pred_region
          %s232 = sand.u32 %s46, 1
          %s233 = scalar_lea.sflag [#allocation5], %s232
          %s234 = sand.u32 %s46, 1
          %s235 = smul.addr %s234, 64
          %s236 = scalar_lea.vmem [#allocation4], %s235
          %s237 = smul.u32 8, %s30
          %s239 = ssub.s32 1024, 1024
          %240 = vsyncadd %s233, %s239
          %s241 = smul.addr %s29, 32
          %s242 = sadd.s32 %s237, %s241
          %s243 = smul.addr %s242, 128
          %s244 = scalar_lea.hbm %s0, %s243
          %s245 = sshll.u32 %s236, 4
          %s246 = int_to_ptr.vmem [resolvable:$true] %s245
          %251 = dma.hbm_to_vmem [thread:$0]  %s244, 1024, %s246, %s233, 128, 128, 8
        $region36: #{tpu_custom_call.1} parent=31 // pred_fallthru
          _
      $region32: #{tpu_custom_call.1} parent=5 // pred_fallthru
        _
      %p252 = scmp.le.s32.totalorder 1, %s22
      %p253 = scmp.lt.s32.totalorder %s22, 9
      %p254 = pnand %p252, %p253
      %p255 = pneg %p254
      // Predicated region
      $region37: #{tpu_custom_call.1} parent=5 // pred_check
        _
      $region38: #{tpu_custom_call.1} parent=5 // pred_check_branch
        %257 = sbr.rel (%p254) target = $region40
      $region39: #{tpu_custom_call.1} parent=5 // pred_region
        %s258 = ssub.s32 %s22, 1
        %s259 = sand.u32 %s49, 1
        %s260 = scalar_lea.sflag [#allocation5], %s259
        %s261 = sand.u32 %s49, 1
        %s262 = smul.addr %s261, 64
        %s263 = scalar_lea.vmem [#allocation4], %s262
        // Predicated region
        $region41: #{tpu_custom_call.1} parent=39 // pred_check
          %p264 = pneg %p62
        $region42: #{tpu_custom_call.1} parent=39 // pred_check_branch
          %266 = sbr.rel (%p264) target = $region44
        $region43: #{tpu_custom_call.1} parent=39 // pred_region
          %267 = dma.done %s260, 1024
        $region44: #{tpu_custom_call.1} parent=39 // pred_fallthru
          _
        %s268 = sand.u32 %s49, 1
        %s269 = scalar_lea.sflag [#allocation5], %s268
        %s270 = sand.u32 %s49, 1
        %s271 = smul.addr %s270, 64
        %s272 = scalar_lea.vmem [#allocation4], %s271
        %p273 = pneg %p62
        %p274 = pneg %p59
        %p275 = pneg %p83
        %p276 = pneg %p80
        %p277 = pneg %p104
        %p278 = pneg %p101
        %p279 = pneg %p125
        %p280 = pneg %p122
        %p281 = pneg %p146
        %p282 = pneg %p143
        %p283 = pneg %p172
        %p284 = pneg %p169
        %s285 = sand.u32 %s159, 1
        %s286 = scalar_lea.sflag [#allocation6], %s285
        %s287 = sand.u32 %s159, 1
        %s288 = scalar_lea.vmem [#allocation7], %s287
        %p289 = pneg %p198
        %p290 = pneg %p195
        %s291 = sand.u32 %s185, 1
        %s292 = scalar_lea.sflag [#allocation9], %s291
        %s293 = sand.u32 %s185, 1
        %s294 = scalar_lea.vmem [#allocation8], %s293
        %s295 = smul.u32 8, %s32
        %p296 = scmp.eq.s32.totalorder %s32, 0
        // Predicated region
        $region45: #{tpu_custom_call.1} parent=39 // pred_check
          %p297 = pneg %p296
        $region46: #{tpu_custom_call.1} parent=39 // pred_check_branch
          %299 = sbr.rel (%p297) target = $region48
        $region47: #{tpu_custom_call.1} parent=39 // pred_region
          %300 = vst [vmem:[#allocation2] sm:$0x1] 0.0
          %301 = vst [vmem:[#allocation3] sm:$0x1] 0.0
        $region48: #{tpu_custom_call.1} parent=39 // pred_fallthru
          _
        %v302 = vld [vmem:[%s263] sm:$0xff]
        %v303 = vld [vmem:[%s263 + $0x8] sm:$0xff]
        %v304 = vld [vmem:[%s263 + $0x10] sm:$0xff]
        %v305 = vld [vmem:[%s263 + $0x18] sm:$0xff]
        %v306 = vld [vmem:[%s263 + $0x20] sm:$0xff]
        %v307 = vld [vmem:[%s263 + $0x28] sm:$0xff]
        %v308 = vld [vmem:[%s263 + $0x30] sm:$0xff]
        %v309 = vld [vmem:[%s263 + $0x38] sm:$0xff]
        %v310 = vld [vmem:[#allocation2] sm:$0x1]
        %v311 = vadd.f32 %v302, %v303
        %v312 = vadd.f32 %v311, %v304
        %v313 = vadd.f32 %v312, %v305
        %v314 = vadd.f32 %v313, %v306
        %v315 = vadd.f32 %v314, %v307
        %v316 = vadd.f32 %v315, %v308
        %v317 = vadd.f32 %v316, %v309
        %v318 = vrot.slane %v317, 4
        %v319 = vadd.f32 %v317, %v318
        %v320 = vrot.slane %v319, 2
        %v321 = vadd.f32 %v319, %v320
        %v322 = vrot.slane %v321, 1
        %v323 = vadd.f32 %v321, %v322
        %v324 = vadd.f32 %v310, %v323
        %325 = vst [vmem:[#allocation2] sm:$0x1] %v324
        %v326 = vld [vmem:[#allocation3] sm:$0x1]
        %v327 = vmul.f32 %v302, %v302
        %v328 = vmul.f32 %v303, %v303
        %v329 = vmul.f32 %v304, %v304
        %v330 = vmul.f32 %v305, %v305
        %v331 = vmul.f32 %v306, %v306
        %v332 = vmul.f32 %v307, %v307
        %v333 = vmul.f32 %v308, %v308
        %v334 = vmul.f32 %v309, %v309
        %v335 = vadd.f32 %v327, %v328
        %v336 = vadd.f32 %v335, %v329
        %v337 = vadd.f32 %v336, %v330
        %v338 = vadd.f32 %v337, %v331
        %v339 = vadd.f32 %v338, %v332
        %v340 = vadd.f32 %v339, %v333
        %v341 = vadd.f32 %v340, %v334
        %v342 = vrot.slane %v341, 4
        %v343 = vadd.f32 %v341, %v342
        %v344 = vrot.slane %v343, 2
        %v345 = vadd.f32 %v343, %v344
        %v346 = vrot.slane %v345, 1
        %v347 = vadd.f32 %v345, %v346
        %v348 = vadd.f32 %v326, %v347
        %349 = vst [vmem:[#allocation3] sm:$0x1] %v348
        %p350 = scmp.eq.s32.totalorder %s32, 3
        // Predicated region
        $region49: #{tpu_custom_call.1} parent=39 // pred_check
          %p351 = pneg %p350
        $region50: #{tpu_custom_call.1} parent=39 // pred_check_branch
          %353 = sbr.rel (%p351) target = $region52
        $region51: #{tpu_custom_call.1} parent=39 // pred_region
          %v354 = vld [vmem:[#allocation2] sm:$0x1]
          %v355 = vld [vmem:[%s1] sm:$0xff]
          %v356 = vld [vmem:[%s1 + $0x8] sm:$0xff]
          %v357 = vld [vmem:[%s1 + $0x10] sm:$0xff]
          %v358 = vld [vmem:[%s1 + $0x18] sm:$0xff]
          %v359 = vld [vmem:[%s1 + $0x20] sm:$0xff]
          %v360 = vld [vmem:[%s1 + $0x28] sm:$0xff]
          %v361 = vld [vmem:[%s1 + $0x30] sm:$0xff]
          %v362 = vld [vmem:[%s1 + $0x38] sm:$0xff]
          %v363 = vld [vmem:[%s1 + $0x40] sm:$0xff]
          %v364 = vld [vmem:[%s1 + $0x48] sm:$0xff]
          %v365 = vld [vmem:[%s1 + $0x50] sm:$0xff]
          %v366 = vld [vmem:[%s1 + $0x58] sm:$0xff]
          %v367 = vld [vmem:[%s1 + $0x60] sm:$0xff]
          %v368 = vld [vmem:[%s1 + $0x68] sm:$0xff]
          %v369 = vld [vmem:[%s1 + $0x70] sm:$0xff]
          %v370 = vld [vmem:[%s1 + $0x78] sm:$0xff]
          %371 = vmatprep.subr.mxu0 0.0
          %372 = vmatpush1.msra.mxu0 %v355
          %373 = vmatprep.subr.mxu0 0.0
          %374 = vmatpush1.msra.mxu0 %v356
          %375 = vmatprep.subr.mxu0 0.0
          %376 = vmatpush1.msra.mxu0 %v357
          %377 = vmatprep.subr.mxu0 0.0
          %378 = vmatpush1.msra.mxu0 %v358
          %379 = vmatprep.subr.mxu0 0.0
          %380 = vmatpush1.msra.mxu0 %v359
          %381 = vmatprep.subr.mxu0 0.0
          %382 = vmatpush1.msra.mxu0 %v360
          %383 = vmatprep.subr.mxu0 0.0
          %384 = vmatpush1.msra.mxu0 %v361
          %385 = vmatprep.subr.mxu0 0.0
          %386 = vmatpush1.msra.mxu0 %v362
          %387 = vmatprep.subr.mxu0 0.0
          %388 = vmatpush1.msra.mxu0 %v363
          %389 = vmatprep.subr.mxu0 0.0
          %390 = vmatpush1.msra.mxu0 %v364
          %391 = vmatprep.subr.mxu0 0.0
          %392 = vmatpush1.msra.mxu0 %v365
          %393 = vmatprep.subr.mxu0 0.0
          %394 = vmatpush1.msra.mxu0 %v366
          %395 = vmatprep.subr.mxu0 0.0
          %396 = vmatpush1.msra.mxu0 %v367
          %397 = vmatprep.subr.mxu0 0.0
          %398 = vmatpush1.msra.mxu0 %v368
          %399 = vmatprep.subr.mxu0 0.0
          %400 = vmatpush1.msra.mxu0 %v369
          %401 = vmatprep.subr.mxu0 0.0
          %402 = vmatpush1.msra.mxu0 %v370
          %403 = vmatprep.subr.mxu0 0.0
          %404 = vmatpush1.msra.mxu0 0.0
          %405 = vmatprep.subr.mxu0 0.0
          %406 = vmatpush1.msra.mxu0 0.0
          %407 = vmatprep.subr.mxu0 0.0
          %408 = vmatpush1.msra.mxu0 0.0
          %409 = vmatprep.subr.mxu0 0.0
          %410 = vmatpush1.msra.mxu0 0.0
          %411 = vmatprep.subr.mxu0 0.0
          %412 = vmatpush1.msra.mxu0 0.0
          %413 = vmatprep.subr.mxu0 0.0
          %414 = vmatpush1.msra.mxu0 0.0
          %415 = vmatprep.subr.mxu0 0.0
          %416 = vmatpush1.msra.mxu0 0.0
          %417 = vmatprep.subr.mxu0 0.0
          %418 = vmatpush1.msra.mxu0 0.0
          %419 = vmatprep.subr.mxu0 0.0
          %420 = vmatpush1.msra.mxu0 0.0
          %421 = vmatprep.subr.mxu0 0.0
          %422 = vmatpush1.msra.mxu0 0.0
          %423 = vmatprep.subr.mxu0 0.0
          %424 = vmatpush1.msra.mxu0 0.0
          %425 = vmatprep.subr.mxu0 0.0
          %426 = vmatpush1.msra.mxu0 0.0
          %427 = vmatprep.subr.mxu0 0.0
          %428 = vmatpush1.msra.mxu0 0.0
          %429 = vmatprep.subr.mxu0 0.0
          %430 = vmatpush1.msra.mxu0 0.0
          %431 = vmatprep.subr.mxu0 0.0
          %432 = vmatpush1.msra.mxu0 0.0
          %433 = vmatprep.subr.mxu0 0.0
          %434 = vmatpush1.msra.mxu0 0.0
          %435 = vmatprep.mubr.f32.mxu0 0.0
          %436 = vmatmul.mubr.f32.gmra.mrb[0].mxu0 %v354
          %v437 = vpop.f32.mrb[0].mxu0
          %v438 = vadd.f32 0.0, %v437
          %v439 = vpop.f32.mrb[0].mxu0
          %440 = vdwg.mxu0
          %v441 = vld [vmem:[#allocation3] sm:$0x1]
          %442 = vmatprep.subr.mxu0 0.0
          %443 = vmatpush1.msra.mxu0 %v355
          %444 = vmatprep.subr.mxu0 0.0
          %445 = vmatpush1.msra.mxu0 %v356
          %446 = vmatprep.subr.mxu0 0.0
          %447 = vmatpush1.msra.mxu0 %v357
          %448 = vmatprep.subr.mxu0 0.0
          %449 = vmatpush1.msra.mxu0 %v358
          %450 = vmatprep.subr.mxu0 0.0
          %451 = vmatpush1.msra.mxu0 %v359
          %452 = vmatprep.subr.mxu0 0.0
          %453 = vmatpush1.msra.mxu0 %v360
          %454 = vmatprep.subr.mxu0 0.0
          %455 = vmatpush1.msra.mxu0 %v361
          %456 = vmatprep.subr.mxu0 0.0
          %457 = vmatpush1.msra.mxu0 %v362
          %458 = vmatprep.subr.mxu0 0.0
          %459 = vmatpush1.msra.mxu0 %v363
          %460 = vmatprep.subr.mxu0 0.0
          %461 = vmatpush1.msra.mxu0 %v364
          %462 = vmatprep.subr.mxu0 0.0
          %463 = vmatpush1.msra.mxu0 %v365
          %464 = vmatprep.subr.mxu0 0.0
          %465 = vmatpush1.msra.mxu0 %v366
          %466 = vmatprep.subr.mxu0 0.0
          %467 = vmatpush1.msra.mxu0 %v367
          %468 = vmatprep.subr.mxu0 0.0
          %469 = vmatpush1.msra.mxu0 %v368
          %470 = vmatprep.subr.mxu0 0.0
          %471 = vmatpush1.msra.mxu0 %v369
          %472 = vmatprep.subr.mxu0 0.0
          %473 = vmatpush1.msra.mxu0 %v370
          %474 = vmatprep.subr.mxu0 0.0
          %475 = vmatpush1.msra.mxu0 0.0
          %476 = vmatprep.subr.mxu0 0.0
          %477 = vmatpush1.msra.mxu0 0.0
          %478 = vmatprep.subr.mxu0 0.0
          %479 = vmatpush1.msra.mxu0 0.0
          %480 = vmatprep.subr.mxu0 0.0
          %481 = vmatpush1.msra.mxu0 0.0
          %482 = vmatprep.subr.mxu0 0.0
          %483 = vmatpush1.msra.mxu0 0.0
          %484 = vmatprep.subr.mxu0 0.0
          %485 = vmatpush1.msra.mxu0 0.0
          %486 = vmatprep.subr.mxu0 0.0
          %487 = vmatpush1.msra.mxu0 0.0
          %488 = vmatprep.subr.mxu0 0.0
          %489 = vmatpush1.msra.mxu0 0.0
          %490 = vmatprep.subr.mxu0 0.0
          %491 = vmatpush1.msra.mxu0 0.0
          %492 = vmatprep.subr.mxu0 0.0
          %493 = vmatpush1.msra.mxu0 0.0
          %494 = vmatprep.subr.mxu0 0.0
          %495 = vmatpush1.msra.mxu0 0.0
          %496 = vmatprep.subr.mxu0 0.0
          %497 = vmatpush1.msra.mxu0 0.0
          %498 = vmatprep.subr.mxu0 0.0
          %499 = vmatpush1.msra.mxu0 0.0
          %500 = vmatprep.subr.mxu0 0.0
          %501 = vmatpush1.msra.mxu0 0.0
          %502 = vmatprep.subr.mxu0 0.0
          %503 = vmatpush1.msra.mxu0 0.0
          %504 = vmatprep.subr.mxu0 0.0
          %505 = vmatpush1.msra.mxu0 0.0
          %506 = vmatprep.mubr.f32.mxu0 0.0
          %507 = vmatmul.mubr.f32.gmra.mrb[0].mxu0 %v441
          %v508 = vpop.f32.mrb[0].mxu0
          %v509 = vadd.f32 0.0, %v508
          %v510 = vpop.f32.mrb[0].mxu0
          %511 = vdwg.mxu0
          %v512 = vmul.f32 %v438, 0.0009765625
          %v513 = vmul.f32 %v509, 0.0009765625
          %v514 = vmul.f32 %v512, %v512
          %v515 = vsub.f32 %v513, %v514
          %v516 = vld [vmem:[%s2] sm:$0xff]
          %v517 = vld [vmem:[%s2 + $0x8] sm:$0xff]
          %v518 = vld [vmem:[%s2 + $0x10] sm:$0xff]
          %v519 = vld [vmem:[%s2 + $0x18] sm:$0xff]
          %vm520 = vcmask 261120
          %v522 = vsel %vm520, %v512, 0
          %524 = vmatprep.subr.mxu0 0.0
          %525 = vmatpush1.msra.mxu0 %v516
          %526 = vmatprep.subr.mxu0 0.0
          %527 = vmatpush1.msra.mxu0 %v517
          %528 = vmatprep.subr.mxu0 0.0
          %529 = vmatpush1.msra.mxu0 %v518
          %530 = vmatprep.subr.mxu0 0.0
          %531 = vmatpush1.msra.mxu0 %v519
          %532 = vmatprep.subr.mxu0 0.0
          %533 = vmatpush1.msra.mxu0 0.0
          %534 = vmatprep.subr.mxu0 0.0
          %535 = vmatpush1.msra.mxu0 0.0
          %536 = vmatprep.subr.mxu0 0.0
          %537 = vmatpush1.msra.mxu0 0.0
          %538 = vmatprep.subr.mxu0 0.0
          %539 = vmatpush1.msra.mxu0 0.0
          %540 = vmatprep.subr.mxu0 0.0
          %541 = vmatpush1.msra.mxu0 0.0
          %542 = vmatprep.subr.mxu0 0.0
          %543 = vmatpush1.msra.mxu0 0.0
          %544 = vmatprep.subr.mxu0 0.0
          %545 = vmatpush1.msra.mxu0 0.0
          %546 = vmatprep.subr.mxu0 0.0
          %547 = vmatpush1.msra.mxu0 0.0
          %548 = vmatprep.subr.mxu0 0.0
          %549 = vmatpush1.msra.mxu0 0.0
          %550 = vmatprep.subr.mxu0 0.0
          %551 = vmatpush1.msra.mxu0 0.0
          %552 = vmatprep.subr.mxu0 0.0
          %553 = vmatpush1.msra.mxu0 0.0
          %554 = vmatprep.subr.mxu0 0.0
          %555 = vmatpush1.msra.mxu0 0.0
          %556 = vmatprep.subr.mxu0 0.0
          %557 = vmatpush1.msra.mxu0 0.0
          %558 = vmatprep.subr.mxu0 0.0
          %559 = vmatpush1.msra.mxu0 0.0
          %560 = vmatprep.subr.mxu0 0.0
          %561 = vmatpush1.msra.mxu0 0.0
          %562 = vmatprep.subr.mxu0 0.0
          %563 = vmatpush1.msra.mxu0 0.0
          %564 = vmatprep.subr.mxu0 0.0
          %565 = vmatpush1.msra.mxu0 0.0
          %566 = vmatprep.subr.mxu0 0.0
          %567 = vmatpush1.msra.mxu0 0.0
          %568 = vmatprep.subr.mxu0 0.0
          %569 = vmatpush1.msra.mxu0 0.0
          %570 = vmatprep.subr.mxu0 0.0
          %571 = vmatpush1.msra.mxu0 0.0
          %572 = vmatprep.subr.mxu0 0.0
          %573 = vmatpush1.msra.mxu0 0.0
          %574 = vmatprep.subr.mxu0 0.0
          %575 = vmatpush1.msra.mxu0 0.0
          %576 = vmatprep.subr.mxu0 0.0
          %577 = vmatpush1.msra.mxu0 0.0
          %578 = vmatprep.subr.mxu0 0.0
          %579 = vmatpush1.msra.mxu0 0.0
          %580 = vmatprep.subr.mxu0 0.0
          %581 = vmatpush1.msra.mxu0 0.0
          %582 = vmatprep.subr.mxu0 0.0
          %583 = vmatpush1.msra.mxu0 0.0
          %584 = vmatprep.subr.mxu0 0.0
          %585 = vmatpush1.msra.mxu0 0.0
          %586 = vmatprep.subr.mxu0 0.0
          %587 = vmatpush1.msra.mxu0 0.0
          %588 = vmatprep.mubr.f32.mxu0 0.0
          %589 = vmatmul.mubr.f32.gmra.mrb[0].mxu0 %v522
          %v590 = vpop.f32.mrb[0].mxu0
          %v591 = vadd.f32 0.0, %v590
          %v592 = vpop.f32.mrb[0].mxu0
          %593 = vdwg.mxu0
          %v595 = vsel %vm520, %v515, 0
          %597 = vmatprep.subr.mxu0 0.0
          %598 = vmatpush1.msra.mxu0 %v516
          %599 = vmatprep.subr.mxu0 0.0
          %600 = vmatpush1.msra.mxu0 %v517
          %601 = vmatprep.subr.mxu0 0.0
          %602 = vmatpush1.msra.mxu0 %v518
          %603 = vmatprep.subr.mxu0 0.0
          %604 = vmatpush1.msra.mxu0 %v519
          %605 = vmatprep.subr.mxu0 0.0
          %606 = vmatpush1.msra.mxu0 0.0
          %607 = vmatprep.subr.mxu0 0.0
          %608 = vmatpush1.msra.mxu0 0.0
          %609 = vmatprep.subr.mxu0 0.0
          %610 = vmatpush1.msra.mxu0 0.0
          %611 = vmatprep.subr.mxu0 0.0
          %612 = vmatpush1.msra.mxu0 0.0
          %613 = vmatprep.subr.mxu0 0.0
          %614 = vmatpush1.msra.mxu0 0.0
          %615 = vmatprep.subr.mxu0 0.0
          %616 = vmatpush1.msra.mxu0 0.0
          %617 = vmatprep.subr.mxu0 0.0
          %618 = vmatpush1.msra.mxu0 0.0
          %619 = vmatprep.subr.mxu0 0.0
          %620 = vmatpush1.msra.mxu0 0.0
          %621 = vmatprep.subr.mxu0 0.0
          %622 = vmatpush1.msra.mxu0 0.0
          %623 = vmatprep.subr.mxu0 0.0
          %624 = vmatpush1.msra.mxu0 0.0
          %625 = vmatprep.subr.mxu0 0.0
          %626 = vmatpush1.msra.mxu0 0.0
          %627 = vmatprep.subr.mxu0 0.0
          %628 = vmatpush1.msra.mxu0 0.0
          %629 = vmatprep.subr.mxu0 0.0
          %630 = vmatpush1.msra.mxu0 0.0
          %631 = vmatprep.subr.mxu0 0.0
          %632 = vmatpush1.msra.mxu0 0.0
          %633 = vmatprep.subr.mxu0 0.0
          %634 = vmatpush1.msra.mxu0 0.0
          %635 = vmatprep.subr.mxu0 0.0
          %636 = vmatpush1.msra.mxu0 0.0
          %637 = vmatprep.subr.mxu0 0.0
          %638 = vmatpush1.msra.mxu0 0.0
          %639 = vmatprep.subr.mxu0 0.0
          %640 = vmatpush1.msra.mxu0 0.0
          %641 = vmatprep.subr.mxu0 0.0
          %642 = vmatpush1.msra.mxu0 0.0
          %643 = vmatprep.subr.mxu0 0.0
          %644 = vmatpush1.msra.mxu0 0.0
          %645 = vmatprep.subr.mxu0 0.0
          %646 = vmatpush1.msra.mxu0 0.0
          %647 = vmatprep.subr.mxu0 0.0
          %648 = vmatpush1.msra.mxu0 0.0
          %649 = vmatprep.subr.mxu0 0.0
          %650 = vmatpush1.msra.mxu0 0.0
          %651 = vmatprep.subr.mxu0 0.0
          %652 = vmatpush1.msra.mxu0 0.0
          %653 = vmatprep.subr.mxu0 0.0
          %654 = vmatpush1.msra.mxu0 0.0
          %655 = vmatprep.subr.mxu0 0.0
          %656 = vmatpush1.msra.mxu0 0.0
          %657 = vmatprep.subr.mxu0 0.0
          %658 = vmatpush1.msra.mxu0 0.0
          %659 = vmatprep.subr.mxu0 0.0
          %660 = vmatpush1.msra.mxu0 0.0
          %661 = vmatprep.mubr.f32.mxu0 0.0
          %662 = vmatmul.mubr.f32.gmra.mrb[0].mxu0 %v595
          %v663 = vpop.f32.mrb[0].mxu0
          %v664 = vadd.f32 1e-05, %v663
          %v665 = vpop.f32.mrb[0].mxu0
          %666 = vdwg.mxu0
          %v667 = vrsqrt.pop %v664
          %v668 = vld [vmem:[%s3] sm:$0x1]
          %v669 = vmul.f32 %v668, %v667
          %670 = vst [vmem:[%s288] sm:$0x1] %v669
          %v671 = vld [vmem:[%s4] sm:$0x1]
          %v672 = vmul.f32 %v591, %v669
          %v673 = vsub.f32 %v671, %v672
          %674 = vst [vmem:[%s294] sm:$0x1] %v673
        $region52: #{tpu_custom_call.1} parent=39 // pred_fallthru
          _
        %s675 = sand.u32 %s159, 1
        %s676 = scalar_lea.sflag [#allocation6], %s675
        %s677 = sand.u32 %s159, 1
        %s678 = scalar_lea.vmem [#allocation7], %s677
        %s679 = sand.u32 %s185, 1
        %s680 = scalar_lea.sflag [#allocation9], %s679
        %s681 = sand.u32 %s185, 1
        %s682 = scalar_lea.vmem [#allocation8], %s681
        // Predicated region
        $region53: #{tpu_custom_call.1} parent=39 // pred_check
          %p683 = pneg %p169
        $region54: #{tpu_custom_call.1} parent=39 // pred_check_branch
          %685 = sbr.rel (%p683) target = $region56
        $region55: #{tpu_custom_call.1} parent=39 // pred_region
          %s687 = ssub.s32 16, 16
          %688 = vsyncadd %s676, %s687
          %s689 = smul.addr %s31, 16
          %s690 = scalar_lea.hbm %s5, %s689
          %s692 = sshll.u32 %s678, 4
          %s693 = int_to_ptr.vmem [resolvable:$true] %s692
          %695 = dma.vmem_to_hbm [thread:$0]  %s693, 16, %s690, %s676
        $region56: #{tpu_custom_call.1} parent=39 // pred_fallthru
          _
        // Predicated region
        $region57: #{tpu_custom_call.1} parent=39 // pred_check
          %p696 = pneg %p195
        $region58: #{tpu_custom_call.1} parent=39 // pred_check_branch
          %698 = sbr.rel (%p696) target = $region60
        $region59: #{tpu_custom_call.1} parent=39 // pred_region
          %s700 = ssub.s32 16, 16
          %701 = vsyncadd %s680, %s700
          %s702 = smul.addr %s31, 16
          %s703 = scalar_lea.hbm %s6, %s702
          %s705 = sshll.u32 %s682, 4
          %s706 = int_to_ptr.vmem [resolvable:$true] %s705
          %708 = dma.vmem_to_hbm [thread:$0]  %s706, 16, %s703, %s680
        $region60: #{tpu_custom_call.1} parent=39 // pred_fallthru
          _
      $region40: #{tpu_custom_call.1} parent=5 // pred_fallthru
        _
      %p709 = scmp.le.s32.totalorder 2, %s22
      // Predicated region
      $region61: #{tpu_custom_call.1} parent=5 // pred_check
        %p710 = pneg %p709
      $region62: #{tpu_custom_call.1} parent=5 // pred_check_branch
        %712 = sbr.rel (%p710) target = $region64
      $region63: #{tpu_custom_call.1} parent=5 // pred_region
        %s713 = ssub.s32 %s22, 2
        // Predicated region
        $region65: #{tpu_custom_call.1} parent=63 // pred_check
          %p714 = pneg %p175
        $region66: #{tpu_custom_call.1} parent=63 // pred_check_branch
          %716 = sbr.rel (%p714) target = $region68
        $region67: #{tpu_custom_call.1} parent=63 // pred_region
          %s717 = sand.u32 %s160, 1
          %s718 = scalar_lea.sflag [#allocation6], %s717
          %s719 = sand.u32 %s160, 1
          %s720 = scalar_lea.vmem [#allocation7], %s719
          %721 = dma.done %s718, 16
        $region68: #{tpu_custom_call.1} parent=63 // pred_fallthru
          _
        // Predicated region
        $region69: #{tpu_custom_call.1} parent=63 // pred_check
          %p722 = pneg %p201
        $region70: #{tpu_custom_call.1} parent=63 // pred_check_branch
          %724 = sbr.rel (%p722) target = $region72
        $region71: #{tpu_custom_call.1} parent=63 // pred_region
          %s725 = sand.u32 %s186, 1
          %s726 = scalar_lea.sflag [#allocation9], %s725
          %s727 = sand.u32 %s186, 1
          %s728 = scalar_lea.vmem [#allocation8], %s727
          %729 = dma.done %s726, 16
        $region72: #{tpu_custom_call.1} parent=63 // pred_fallthru
          _
      $region64: #{tpu_custom_call.1} parent=5 // pred_fallthru
        _
    $region6: #{tpu_custom_call.1} parent=1 // loop_footer
      %s26 = sadd.s32 1, %s22
    $region7: #{tpu_custom_call.1} parent=1 // loop_footer_branch
      %21 = sbr.rel target = $region3
    $region8: #{tpu_custom_call.1} parent=1 // loop_exit
      _
    %730 = vsyncpa [#allocation5], 1
    %s731 = scalar_lea.sflag [#allocation5], 1
    %732 = vsyncpa %s731, 1
    %733 = vsyncpa [#allocation6], 1
    %s734 = scalar_lea.sflag [#allocation6], 1
    %735 = vsyncpa %s734, 1
    %736 = vsyncpa [#allocation9], 1
    %s737 = scalar_lea.sflag [#allocation9], 1
    %738 = vsyncpa %s737, 1

</llo_original>
